<compile_context>
chip_gen: v5e
topology: v5e:2x2
jax: 0.10.0
libtpu: 0.0.40
codegen_flags: <defaults>
</compile_context>

<pallas_src>
import jax
import jax.numpy as jnp
from jax.experimental import pallas as pl
from jax.experimental.pallas import tpu as pltpu


def _phead_kernel(x_ref, w1_ref, b1_ref, w2_ref, b2_ref, o_ref):
    # x_ref: (TM, E); w1_ref: (E, H); b1_ref: (1, H); w2_ref: (H, O); b2_ref: (1, O)
    x = x_ref[...]
    h = jnp.dot(x, w1_ref[...], preferred_element_type=jnp.float32) + b1_ref[...]
    h = jnp.maximum(h, 0.0)                                   # ReLU (VPU)
    y = jnp.dot(h, w2_ref[...], preferred_element_type=jnp.float32) + b2_ref[...]
    o_ref[...] = y.astype(o_ref.dtype)


def phead_forward(x, w1, b1, w2, b2):
    """x: (B, N, E) float32.
    w1: (H, E), b1: (H,)  -- PyTorch Linear(embed_dim, embed_dim) params.
    w2: (O, H), b2: (O,)  -- PyTorch Linear(embed_dim, num_node) params.
    Returns (B, 1, N, O) matching PHEAD.forward (unsqueeze(1))."""
    B, N, E = x.shape
    H = w1.shape[0]
    O = w2.shape[0]
    M = B * N

    # Flatten rows; pre-transpose weights on the host (no in-kernel transposes).
    x2 = x.reshape(M, E).astype(jnp.float32)
    w1t = w1.T.astype(jnp.float32)            # (E, H)
    w2t = w2.T.astype(jnp.float32)            # (H, O)
    b1r = b1.reshape(1, H).astype(jnp.float32)
    b2r = b2.reshape(1, O).astype(jnp.float32)

    # Pad row count up to a multiple of 8 sublanes so the BlockSpec is legal
    # for any B*N; padded rows compute garbage that is sliced off below.
    M_pad = ((M + 7) // 8) * 8
    if M_pad != M:
        x2 = jnp.pad(x2, ((0, M_pad - M), (0, 0)))

    # Largest row tile (multiple of 8, capped at 512) that evenly covers the
    # padded rows -> minimal number of grid steps; a single step for small M.
    TM = min(M_pad, 512)
    while M_pad % TM != 0:
        TM -= 8
    grid = (M_pad // TM,)

    grid_spec = pltpu.PrefetchScalarGridSpec(
        num_scalar_prefetch=0,
        grid=grid,
        in_specs=[
            pl.BlockSpec((TM, E), lambda i: (i, 0)),
            pl.BlockSpec((E, H), lambda i: (0, 0)),
            pl.BlockSpec((1, H), lambda i: (0, 0)),
            pl.BlockSpec((H, O), lambda i: (0, 0)),
            pl.BlockSpec((1, O), lambda i: (0, 0)),
        ],
        out_specs=pl.BlockSpec((TM, O), lambda i: (i, 0)),
    )

    out = pl.pallas_call(
        _phead_kernel,
        out_shape=jax.ShapeDtypeStruct((M_pad, O), jnp.float32),
        grid_spec=grid_spec,
        compiler_params=pltpu.CompilerParams(
            dimension_semantics=("parallel",)),
    )(x2, w1t, b1r, w2t, b2r)

    out = out[:M]
    # out.unsqueeze(1): (B, N, O) -> (B, 1, N, O)
    return out.reshape(B, N, O)[:, None, :, :]


def phead_reference(x, w1, b1, w2, b2):
    """Plain-JAX reference mirroring PHEAD.forward line-by-line."""
    h = jnp.maximum(jnp.einsum("bne,he->bnh", x, w1) + b1, 0.0)   # fc1 + ReLU
    y = jnp.einsum("bnh,oh->bno", h, w2) + b2                     # fc2
    return y[:, None, :, :]                                       # unsqueeze(1)


if __name__ == "__main__":
    # Module hyper-parameters (small, consistent with the forward pass).
    embed_dim = 32    # E == H (Mlp hidden_features = embed_dim)
    num_node = 8      # O
    batch = 2
    n_rows = num_node  # treat x as (batch, num_node, embed_dim)

    key = jax.random.PRNGKey(0)
    k_x, k_w1, k_b1, k_w2, k_b2 = jax.random.split(key, 5)

    x = jax.random.normal(k_x, (batch, n_rows, embed_dim), dtype=jnp.float32)

    # Mlp.fc1: Linear(embed_dim, embed_dim); Mlp.fc2: Linear(embed_dim, num_node)
    w1 = jax.random.normal(k_w1, (embed_dim, embed_dim), dtype=jnp.float32) * 0.1
    b1 = jax.random.normal(k_b1, (embed_dim,), dtype=jnp.float32) * 0.1
    w2 = jax.random.normal(k_w2, (num_node, embed_dim), dtype=jnp.float32) * 0.1
    b2 = jax.random.normal(k_b2, (num_node,), dtype=jnp.float32) * 0.1

    # TODO(synk): PHEAD.norm (LayerNorm) is constructed in __init__ but never
    # called in forward(); it is intentionally not lowered to Pallas.

    out = phead_forward(x, w1, b1, w2, b2)
    out = jax.block_until_ready(out)

    ref = phead_reference(x, w1, b1, w2, b2)
    assert out.shape == (batch, 1, n_rows, num_node)
    assert jnp.allclose(out, ref, atol=1e-4, rtol=1e-4), "mismatch vs reference"

    print("KERNEL_OK")
</pallas_src>

<mosaic_0001>
module attributes {stable_mosaic.version = 11 : i64} {
  func.func @_phead_kernel(%arg0: i32, %arg1: memref<16x32xf32, #tpu.memory_space<vmem>>, %arg2: memref<32x32xf32, #tpu.memory_space<vmem>>, %arg3: memref<1x32xf32, #tpu.memory_space<vmem>>, %arg4: memref<32x8xf32, #tpu.memory_space<vmem>>, %arg5: memref<1x8xf32, #tpu.memory_space<vmem>>, %arg6: memref<16x8xf32, #tpu.memory_space<vmem>>) attributes {dimension_semantics = [#tpu.dimension_semantics<parallel>], iteration_bounds = array<i64: 1>, scalar_prefetch = 0 : i64, scratch_operands = 0 : i64, tpu.core_type = #tpu.core_type<tc>, window_params = [{transform_indices = @transform_0, window_bounds = array<i64: 16, 32>}, {pipeline_mode = #tpu.pipeline_mode<synchronous>, transform_indices = @transform_1, window_bounds = array<i64: 32, 32>}, {pipeline_mode = #tpu.pipeline_mode<synchronous>, transform_indices = @transform_2, window_bounds = array<i64: 1, 32>}, {pipeline_mode = #tpu.pipeline_mode<synchronous>, transform_indices = @transform_3, window_bounds = array<i64: 32, 8>}, {pipeline_mode = #tpu.pipeline_mode<synchronous>, transform_indices = @transform_4, window_bounds = array<i64: 1, 8>}, {transform_indices = @transform_5, window_bounds = array<i64: 16, 8>}]} {
    %c0 = arith.constant 0 : index
    %c0_0 = arith.constant 0 : index
    %0 = vector.load %arg1[%c0, %c0_0] : memref<16x32xf32, #tpu.memory_space<vmem>>, vector<16x32xf32>
    %c0_1 = arith.constant 0 : index
    %c0_2 = arith.constant 0 : index
    %1 = vector.load %arg2[%c0_1, %c0_2] : memref<32x32xf32, #tpu.memory_space<vmem>>, vector<32x32xf32>
    %cst = arith.constant dense<0.000000e+00> : vector<16x32xf32>
    %2 = tpu.matmul %0, %1, %cst {dimension_numbers = #tpu.dot_dimension_numbers<[1], [0], [0], [1], [0, 0, 1, 1], [], []>} : vector<16x32xf32>, vector<32x32xf32>, vector<16x32xf32> -> vector<16x32xf32>
    %c0_3 = arith.constant 0 : index
    %c0_4 = arith.constant 0 : index
    %3 = vector.load %arg3[%c0_3, %c0_4] : memref<1x32xf32, #tpu.memory_space<vmem>>, vector<1x32xf32>
    %4 = vector.broadcast %3 : vector<1x32xf32> to vector<16x32xf32>
    %5 = arith.addf %2, %4 : vector<16x32xf32>
    %cst_5 = arith.constant 0.000000e+00 : f32
    %6 = vector.broadcast %cst_5 : f32 to vector<16x32xf32>
    %7 = arith.maximumf %5, %6 : vector<16x32xf32>
    %c0_6 = arith.constant 0 : index
    %c0_7 = arith.constant 0 : index
    %8 = vector.load %arg4[%c0_6, %c0_7] : memref<32x8xf32, #tpu.memory_space<vmem>>, vector<32x8xf32>
    %cst_8 = arith.constant dense<0.000000e+00> : vector<16x8xf32>
    %9 = tpu.matmul %7, %8, %cst_8 {dimension_numbers = #tpu.dot_dimension_numbers<[1], [0], [0], [1], [0, 0, 1, 1], [], []>} : vector<16x32xf32>, vector<32x8xf32>, vector<16x8xf32> -> vector<16x8xf32>
    %c0_9 = arith.constant 0 : index
    %c0_10 = arith.constant 0 : index
    %10 = vector.load %arg5[%c0_9, %c0_10] : memref<1x8xf32, #tpu.memory_space<vmem>>, vector<1x8xf32>
    %11 = vector.broadcast %10 : vector<1x8xf32> to vector<16x8xf32>
    %12 = arith.addf %9, %11 : vector<16x8xf32>
    %c0_11 = arith.constant 0 : index
    %c0_12 = arith.constant 0 : index
    %13 = vector.load %arg6[%c0_11, %c0_12] : memref<16x8xf32, #tpu.memory_space<vmem>>, vector<16x8xf32>
    tpu.vector_store %arg6[%c0_11, %c0_12], %12 {strides = array<i32>} : memref<16x8xf32, #tpu.memory_space<vmem>>, vector<16x8xf32>,
    return
  }
  func.func @transform_0(%arg0: i32) -> (i32, i32) {
    %c0_i32 = arith.constant 0 : i32
    %c0_i32_0 = arith.constant 0 : i32
    return %arg0, %c0_i32 : i32, i32
  }
  func.func @transform_1(%arg0: i32) -> (i32, i32) {
    %c0_i32 = arith.constant 0 : i32
    %c0_i32_0 = arith.constant 0 : i32
    %c0_i32_1 = arith.constant 0 : i32
    return %c0_i32, %c0_i32_0 : i32, i32
  }
  func.func @transform_2(%arg0: i32) -> (i32, i32) {
    %c0_i32 = arith.constant 0 : i32
    %c0_i32_0 = arith.constant 0 : i32
    %c0_i32_1 = arith.constant 0 : i32
    return %c0_i32, %c0_i32_0 : i32, i32
  }
  func.func @transform_3(%arg0: i32) -> (i32, i32) {
    %c0_i32 = arith.constant 0 : i32
    %c0_i32_0 = arith.constant 0 : i32
    %c0_i32_1 = arith.constant 0 : i32
    return %c0_i32, %c0_i32_0 : i32, i32
  }
  func.func @transform_4(%arg0: i32) -> (i32, i32) {
    %c0_i32 = arith.constant 0 : i32
    %c0_i32_0 = arith.constant 0 : i32
    %c0_i32_1 = arith.constant 0 : i32
    return %c0_i32, %c0_i32_0 : i32, i32
  }
  func.func @transform_5(%arg0: i32) -> (i32, i32) {
    %c0_i32 = arith.constant 0 : i32
    %c0_i32_0 = arith.constant 0 : i32
    return %arg0, %c0_i32 : i32, i32
  }
}

</mosaic_0001>

<llo_original>
// kernel: tpu_custom_call.1
$region0: #{tpu_custom_call.1}
  #allocation0 [shape = 'u32[]', space=smem, size = 0x4, offset = 0x4, fixed_abs, tag = 'smem constant byte address 0x4 - core index']
  #allocation1 [shape = 'u32[72,128]{1,0:T(1,128)}', space=vmem, size = 0x9000, scoped, tag = 'internal scratch']
  %s0 = inlined_call_operand.hbm [shape: f32[16,32], index: 0, kind: input, shape index: {}]
  %s1 = inlined_call_operand.vmem [shape: f32[32,32], index: 1, kind: input, shape index: {}]
  %s2 = inlined_call_operand.vmem [shape: f32[1,32], index: 2, kind: input, shape index: {}]
  %s3 = inlined_call_operand.vmem [shape: f32[32,8], index: 3, kind: input, shape index: {}]
  %s4 = inlined_call_operand.vmem [shape: f32[1,8], index: 4, kind: input, shape index: {}]
  %s5 = inlined_call_operand.vmem [shape: f32[16,8], index: 5, kind: output, shape index: {}]
  %s6 = sld [smem:[#allocation0]]
  $region34: #{tpu_custom_call.1} parent=0
    _
  %s8 = ssub.s32 1, %s6
  %s9 = scalar_select 0, %s8, %s6
  $region1: #{tpu_custom_call.1} parent=0
    #allocation2 [shape = 'u8[8192]{0}', space=vmem, size = 0x2000, scoped, tag = 'input window, operand 0, single buffered']
    #allocation3 [shape = 's32[1]{0}', space=sflag, size = 0x4, scoped, tag = 'scoped memory for tpu_custom_call.1']
    %10 = vsyncpa [#allocation3], 0
    // Predicated region
    $region2: #{tpu_custom_call.1} parent=1 // pred_check
      _
    $region3: #{tpu_custom_call.1} parent=1 // pred_check_branch
      %12 = sbr.rel (0) target = $region5
    $region4: #{tpu_custom_call.1} parent=1 // pred_region
      %14 = vsyncadd [#allocation3], 0
      %s15 = sshll.u32 %s0, 4
      %s16 = int_to_ptr.hbm [resolvable:$true] %s15
      %s17 = sshll.u32 [#allocation2], 4
      %s18 = int_to_ptr.vmem [resolvable:$true] %s17
      %23 = dma.hbm_to_vmem [thread:$0]  %s16, 256, %s18, [#allocation3], 128, 128, 8
    $region5: #{tpu_custom_call.1} parent=1 // pred_fallthru
      _
    // Predicated region
    $region6: #{tpu_custom_call.1} parent=1 // pred_check
      _
    $region7: #{tpu_custom_call.1} parent=1 // pred_check_branch
      %25 = sbr.rel (0) target = $region9
    $region8: #{tpu_custom_call.1} parent=1 // pred_region
      _
    $region9: #{tpu_custom_call.1} parent=1 // pred_fallthru
      _
    // Predicated region
    $region10: #{tpu_custom_call.1} parent=1 // pred_check
      _
    $region11: #{tpu_custom_call.1} parent=1 // pred_check_branch
      %27 = sbr.rel (0) target = $region13
    $region12: #{tpu_custom_call.1} parent=1 // pred_region
      _
    $region13: #{tpu_custom_call.1} parent=1 // pred_fallthru
      _
    // Predicated region
    $region14: #{tpu_custom_call.1} parent=1 // pred_check
      _
    $region15: #{tpu_custom_call.1} parent=1 // pred_check_branch
      %29 = sbr.rel (0) target = $region17
    $region16: #{tpu_custom_call.1} parent=1 // pred_region
      _
    $region17: #{tpu_custom_call.1} parent=1 // pred_fallthru
      _
    // Predicated region
    $region18: #{tpu_custom_call.1} parent=1 // pred_check
      _
    $region19: #{tpu_custom_call.1} parent=1 // pred_check_branch
      %31 = sbr.rel (0) target = $region21
    $region20: #{tpu_custom_call.1} parent=1 // pred_region
      _
    $region21: #{tpu_custom_call.1} parent=1 // pred_fallthru
      _
    // Predicated region
    $region22: #{tpu_custom_call.1} parent=1 // pred_check
      _
    $region23: #{tpu_custom_call.1} parent=1 // pred_check_branch
      %33 = sbr.rel (0) target = $region25
    $region24: #{tpu_custom_call.1} parent=1 // pred_region
      %35 = dma.done [#allocation3], 256
    $region25: #{tpu_custom_call.1} parent=1 // pred_fallthru
      _
    %v36 = vld [vmem:[#allocation2] sm:$0xff]
    %v37 = vld [vmem:[#allocation2 + $0x8] sm:$0xff]
    %v38 = vld [vmem:[%s1] sm:$0xff]
    %v39 = vld [vmem:[%s1 + $0x8] sm:$0xff]
    %v40 = vld [vmem:[%s1 + $0x10] sm:$0xff]
    %v41 = vld [vmem:[%s1 + $0x18] sm:$0xff]
    %v42 = vld [vmem:[%s2] sm:$0x1]
    %v44 = vperm.slane %v42, 0
    %vm46 = vcmask 261120
    %v48 = vsel %vm46, %v36, 0
    %v51 = vsel %vm46, %v37, 0
    %53 = vmatpush.msra.mxu0 0.0
    %54 = vmatpush.msra.mxu0 0.0
    %55 = vmatpush.msra.mxu0 0.0
    %56 = vmatpush.msra.mxu0 0.0
    %57 = vmatpush.msra.mxu0 0.0
    %58 = vmatpush.msra.mxu0 0.0
    %59 = vmatpush.msra.mxu0 0.0
    %60 = vmatpush.msra.mxu0 0.0
    %61 = vmatpush.msra.mxu0 0.0
    %62 = vmatpush.msra.mxu0 0.0
    %63 = vmatpush.msra.mxu0 0.0
    %64 = vmatpush.msra.mxu0 0.0
    %65 = vmatpush.msra.mxu0 %v41
    %66 = vmatpush.msra.mxu0 %v40
    %67 = vmatpush.msra.mxu0 %v39
    %68 = vmatpush.msra.mxu0 %v38
    %69 = vmatmul.f32.gmra.mxu0 %v48
    %v70 = vpop.f32.mrf.mxu0
    %v71 = vadd.f32 %v44, %v70
    %72 = vmatmul.f32.gmra.mxu0 %v51
    %v73 = vpop.f32.mrf.mxu0
    %v74 = vadd.f32 %v44, %v73
    %75 = vdwg.mxu0
    %v76 = vmax.f32 %v71, 0.0
    %v77 = vmax.f32 %v74, 0.0
    %v78 = vld [vmem:[%s3] sm:$0xff]
    %v79 = vld [vmem:[%s3 + $0x8] sm:$0xff]
    %v80 = vld [vmem:[%s3 + $0x10] sm:$0xff]
    %v81 = vld [vmem:[%s3 + $0x18] sm:$0xff]
    %v82 = vld [vmem:[%s4] sm:$0x1]
    %v84 = vperm.slane %v82, 0
    %v87 = vsel %vm46, %v76, 0
    %v90 = vsel %vm46, %v77, 0
    %92 = vmatpush.msra.mxu0 0.0
    %93 = vmatpush.msra.mxu0 0.0
    %94 = vmatpush.msra.mxu0 0.0
    %95 = vmatpush.msra.mxu0 0.0
    %96 = vmatpush.msra.mxu0 0.0
    %97 = vmatpush.msra.mxu0 0.0
    %98 = vmatpush.msra.mxu0 0.0
    %99 = vmatpush.msra.mxu0 0.0
    %100 = vmatpush.msra.mxu0 0.0
    %101 = vmatpush.msra.mxu0 0.0
    %102 = vmatpush.msra.mxu0 0.0
    %103 = vmatpush.msra.mxu0 0.0
    %104 = vmatpush.msra.mxu0 %v81
    %105 = vmatpush.msra.mxu0 %v80
    %106 = vmatpush.msra.mxu0 %v79
    %107 = vmatpush.msra.mxu0 %v78
    %108 = vmatmul.f32.gmra.mxu0 %v87
    %v109 = vpop.f32.mrf.mxu0
    %v110 = vadd.f32 %v84, %v109
    %111 = vmatmul.f32.gmra.mxu0 %v90
    %v112 = vpop.f32.mrf.mxu0
    %v113 = vadd.f32 %v84, %v112
    %114 = vdwg.mxu0
    %vm115 = vcmask 64512
    %116 = vst.msk [vmem:[%s5] sm:$0xff] %vm115, %v110
    %117 = vst.msk [vmem:[%s5 + $0x8] sm:$0xff] %vm115, %v113
    // Predicated region
    $region26: #{tpu_custom_call.1} parent=1 // pred_check
      _
    $region27: #{tpu_custom_call.1} parent=1 // pred_check_branch
      %119 = sbr.rel (0) target = $region29
    $region28: #{tpu_custom_call.1} parent=1 // pred_region
      _
    $region29: #{tpu_custom_call.1} parent=1 // pred_fallthru
      _
    // Predicated region
    $region30: #{tpu_custom_call.1} parent=1 // pred_check
      _
    $region31: #{tpu_custom_call.1} parent=1 // pred_check_branch
      %121 = sbr.rel (0) target = $region33
    $region32: #{tpu_custom_call.1} parent=1 // pred_region
      _
    $region33: #{tpu_custom_call.1} parent=1 // pred_fallthru
      _
    %122 = vsyncpa [#allocation3], 1

</llo_original>
